<compile_context>
chip_gen: v7x
topology: tpu7x:2x2x1
jax: 0.10.0
libtpu: 0.0.40
codegen_flags: <defaults>
</compile_context>

<pallas_src>
import jax
import jax.numpy as jnp
from jax.experimental import pallas as pl
from jax.experimental.pallas import tpu as pltpu

EPS = 1e-5


def _make_kernel(N, H, W, Cin, C):
    """Fused BasicBlock kernel for static shape (N, H, W, Cin) -> (N, H, W, C)."""
    NH = N * H
    WC = W * C
    inv_nhw = 1.0 / float(N * H * W)
    assert (W & (W - 1)) == 0, "lane-group roll reduce assumes power-of-two W"
    # TODO(synk): non-power-of-two W needs a selector-matmul fallback for BN stats.
    n_red = (W - 1).bit_length()            # log2(W) roll+add steps

    def chan_mean(row):
        # row: (1, W*C) column sums.  Circular lane rolls by C, 2C, 4C, ... give
        # every lane the sum over the W positions of its own channel (already
        # broadcast along w) -- XLU slot only, no MXU round trip.
        s = row
        shift = C
        for _ in range(n_red):
            s = s + pltpu.roll(s, shift=shift, axis=1)
            shift *= 2
        return s * inv_nhw

    def kernel(lhs1_ref, bw1_ref, bw2_ref, shift_ref,
               g1_ref, b1_ref, g2_ref, b2_ref, gs_ref, bs_ref, out_ref):
        def bn(x, g, b):
            # Training-mode batch norm (biased variance, two-pass), per channel.
            mu = chan_mean(jnp.sum(x, axis=0, keepdims=True))
            d = x - mu
            var = chan_mean(jnp.sum(d * d, axis=0, keepdims=True))
            return d * (jax.lax.rsqrt(var + EPS) * g) + b

        # ---- conv1 + folded 1x1 shortcut: one MXU matmul (K = 3*W*Cin) -------
        acc = jnp.dot(lhs1_ref[...], bw1_ref[...],
                      preferred_element_type=jnp.float32)           # (NH, 2*WC)
        h1 = jnp.maximum(bn(acc[:, :WC], g1_ref[...], b1_ref[...]), 0.0)
        sc = acc[:, WC:]                                            # shortcut pre-BN

        # ---- conv2 im2col along H, built in-register --------------------------
        # The shift matrix bakes in the per-image zero H padding; the row slices
        # below are sublane-aligned (0 / NH multiples of 8).
        ud = jnp.dot(shift_ref[...], h1,
                     preferred_element_type=jnp.float32)            # (2*NH, WC)
        lhs2 = jnp.concatenate([ud[:NH, :], h1, ud[NH:, :]], axis=1)  # (NH, 3*WC)
        acc2 = jnp.dot(lhs2, bw2_ref[...],
                       preferred_element_type=jnp.float32)          # (NH, WC)

        # ---- BN2 + BN(shortcut) + residual + ReLU; full-lane unmasked store ---
        out_ref[...] = jnp.maximum(
            bn(acc2, g2_ref[...], b2_ref[...])
            + bn(sc, gs_ref[...], bs_ref[...]), 0.0)

    return kernel


def basic_block(x_nchw, params):
    """NCHW input -> NCHW output, matching the PyTorch BasicBlock (stride=1)."""
    N, Cin, H, W = x_nchw.shape
    C = params["w1"].shape[-1]
    f32 = jnp.float32
    WC, WCin = W * C, W * Cin
    NH = N * H

    # ---- layout plumbing (XLA side, all tiny): im2col along H for conv1 -------
    x_nhwc = jnp.transpose(x_nchw, (0, 2, 3, 1)).astype(f32)        # (N,H,W,Cin)
    xpadh = jnp.pad(x_nhwc, ((0, 0), (1, 1), (0, 0), (0, 0)))       # (N,H+2,W,Cin)
    lhs1 = jnp.concatenate(
        [xpadh[:, kh:kh + H].reshape(N, H, WCin) for kh in range(3)],
        axis=-1).reshape(NH, 3 * WCin)                              # (NH, 3*W*Cin)

    # ---- block-banded weights (SAME W padding folded in as dropped taps) ------
    kw_i = jnp.arange(3)[:, None, None]
    v_i = jnp.arange(W)[None, :, None]                              # input col w'
    w_i = jnp.arange(W)[None, None, :]                              # output col w
    band = (v_i == w_i + kw_i - 1).astype(f32)                      # (3, W, W)

    w1 = params["w1"].astype(f32)
    w2 = params["w2"].astype(f32)
    ws = params["ws"].astype(f32)
    bw1_main = jnp.einsum("kvw,hkio->hviwo", band, w1).reshape(3 * WCin, WC)
    sc_mid = jnp.einsum("vw,io->viwo", jnp.eye(W, dtype=f32), ws).reshape(WCin, WC)
    bw1_sc = jnp.concatenate([jnp.zeros((WCin, WC), f32), sc_mid,
                              jnp.zeros((WCin, WC), f32)], axis=0)
    bw1 = jnp.concatenate([bw1_main, bw1_sc], axis=1)               # (3*WCin, 2*WC)
    bw2 = jnp.einsum("kvw,hkio->hviwo", band, w2).reshape(3 * WC, WC)

    # ---- shift matrix for conv2's H-neighbour rows (image boundaries -> 0) ----
    r = jnp.arange(NH)[:, None]
    j = jnp.arange(NH)[None, :]
    up_m = ((j == r - 1) & ((r % H) != 0)).astype(f32)              # row r <- r-1
    dn_m = ((j == r + 1) & ((r % H) != (H - 1))).astype(f32)        # row r <- r+1
    shift_mat = jnp.concatenate([up_m, dn_m], axis=0)               # (2*NH, NH)

    # BN affine params pre-tiled to the full (1, W*C) lane layout (hoisted bcast).
    tile_p = lambda p: jnp.tile(p.reshape(1, C).astype(f32), (1, W))

    vmem = pl.BlockSpec(memory_space=pltpu.MemorySpace.VMEM)
    out2d = pl.pallas_call(
        _make_kernel(N, H, W, Cin, C),
        out_shape=jax.ShapeDtypeStruct((NH, WC), jnp.float32),
        in_specs=[vmem] * 10,
        out_specs=vmem,
    )(lhs1, bw1, bw2, shift_mat,
      tile_p(params["g1"]), tile_p(params["b1"]),
      tile_p(params["g2"]), tile_p(params["b2"]),
      tile_p(params["gs"]), tile_p(params["bs"]))

    out = out2d.reshape(N, H, W, C)
    return jnp.transpose(out, (0, 3, 1, 2))                          # back to NCHW


# ---------------------------- pure-JAX reference ----------------------------
def _ref_forward(x_nchw, p):
    x = jnp.transpose(x_nchw, (0, 2, 3, 1)).astype(jnp.float32)

    def conv(x, w, pad):
        return jax.lax.conv_general_dilated(
            x, w, window_strides=(1, 1), padding=((pad, pad), (pad, pad)),
            dimension_numbers=("NHWC", "HWIO", "NHWC"))

    def bn(x, g, b):
        mu = jnp.mean(x, axis=(0, 1, 2), keepdims=True)
        var = jnp.mean((x - mu) ** 2, axis=(0, 1, 2), keepdims=True)
        return (x - mu) * jax.lax.rsqrt(var + EPS) * g + b

    h = jax.nn.relu(bn(conv(x, p["w1"], 1), p["g1"], p["b1"]))
    h = bn(conv(h, p["w2"], 1), p["g2"], p["b2"])
    s = bn(conv(x, p["ws"][None, None], 0), p["gs"], p["bs"])
    out = jax.nn.relu(h + s)
    return jnp.transpose(out, (0, 3, 1, 2))


if __name__ == "__main__":
    # Shapes consistent with BasicBlock(in_planes=4, planes=8, stride=1)
    N, Cin, C, H, W = 2, 4, 8, 16, 16
    key = jax.random.PRNGKey(0)
    ks = jax.random.split(key, 9)

    params = {
        "w1": 0.1 * jax.random.normal(ks[0], (3, 3, Cin, C), jnp.float32),
        "w2": 0.1 * jax.random.normal(ks[1], (3, 3, C, C), jnp.float32),
        "ws": 0.1 * jax.random.normal(ks[2], (Cin, C), jnp.float32),
        "g1": 1.0 + 0.1 * jax.random.normal(ks[3], (1, C), jnp.float32),
        "b1": 0.1 * jax.random.normal(ks[4], (1, C), jnp.float32),
        "g2": 1.0 + 0.1 * jax.random.normal(ks[5], (1, C), jnp.float32),
        "b2": 0.1 * jax.random.normal(ks[6], (1, C), jnp.float32),
        "gs": jnp.ones((1, C), jnp.float32),
        "bs": jnp.zeros((1, C), jnp.float32),
    }
    x = jax.random.normal(ks[8], (N, Cin, H, W), jnp.float32)

    out = basic_block(x, params)
    jax.block_until_ready(out)

    ref = _ref_forward(x, params)
    assert out.shape == (N, C, H, W)
    err = jnp.max(jnp.abs(out - ref))
    assert jnp.allclose(out, ref, atol=1e-3, rtol=1e-3), f"max abs err {err}"
    print("KERNEL_OK")
</pallas_src>

<mosaic_0001>
module attributes {stable_mosaic.version = 11 : i64} {
  func.func @kernel(%arg0: memref<32x192xf32, #tpu.memory_space<vmem>>, %arg1: memref<192x256xf32, #tpu.memory_space<vmem>>, %arg2: memref<384x128xf32, #tpu.memory_space<vmem>>, %arg3: memref<64x32xf32, #tpu.memory_space<vmem>>, %arg4: memref<1x128xf32, #tpu.memory_space<vmem>>, %arg5: memref<1x128xf32, #tpu.memory_space<vmem>>, %arg6: memref<1x128xf32, #tpu.memory_space<vmem>>, %arg7: memref<1x128xf32, #tpu.memory_space<vmem>>, %arg8: memref<1x128xf32, #tpu.memory_space<vmem>>, %arg9: memref<1x128xf32, #tpu.memory_space<vmem>>, %arg10: memref<32x128xf32, #tpu.memory_space<vmem>>) attributes {dimension_semantics = [], scalar_prefetch = 0 : i64, scratch_operands = 0 : i64, tpu.core_type = #tpu.core_type<tc>} {
    %c0 = arith.constant 0 : index
    %c0_0 = arith.constant 0 : index
    %0 = vector.load %arg0[%c0, %c0_0] : memref<32x192xf32, #tpu.memory_space<vmem>>, vector<32x192xf32>
    %c0_1 = arith.constant 0 : index
    %c0_2 = arith.constant 0 : index
    %1 = vector.load %arg1[%c0_1, %c0_2] : memref<192x256xf32, #tpu.memory_space<vmem>>, vector<192x256xf32>
    %cst = arith.constant dense<0.000000e+00> : vector<32x256xf32>
    %2 = tpu.matmul %0, %1, %cst {dimension_numbers = #tpu.dot_dimension_numbers<[1], [0], [0], [1], [0, 0, 1, 1], [], []>} : vector<32x192xf32>, vector<192x256xf32>, vector<32x256xf32> -> vector<32x256xf32>
    %3 = vector.extract_strided_slice %2 {offsets = [0, 0], sizes = [32, 128], strides = [1, 1]} : vector<32x256xf32> to vector<32x128xf32>
    %c0_3 = arith.constant 0 : index
    %c0_4 = arith.constant 0 : index
    %4 = vector.load %arg4[%c0_3, %c0_4] : memref<1x128xf32, #tpu.memory_space<vmem>>, vector<1x128xf32>
    %c0_5 = arith.constant 0 : index
    %c0_6 = arith.constant 0 : index
    %5 = vector.load %arg5[%c0_5, %c0_6] : memref<1x128xf32, #tpu.memory_space<vmem>>, vector<1x128xf32>
    %cst_7 = arith.constant dense<0.000000e+00> : vector<128xf32>
    %6 = vector.multi_reduction <add>, %3, %cst_7 [0] : vector<32x128xf32> to vector<128xf32>
    %7 = vector.shape_cast %6 : vector<128xf32> to vector<1x128xf32>
    %c8_i32 = arith.constant 8 : i32
    %8 = tpu.dynamic_rotate %7 by %c8_i32 dim 1 : vector<1x128xf32>, i32 -> vector<1x128xf32>
    %9 = arith.addf %7, %8 : vector<1x128xf32>
    %c16_i32 = arith.constant 16 : i32
    %10 = tpu.dynamic_rotate %9 by %c16_i32 dim 1 : vector<1x128xf32>, i32 -> vector<1x128xf32>
    %11 = arith.addf %9, %10 : vector<1x128xf32>
    %c32_i32 = arith.constant 32 : i32
    %12 = tpu.dynamic_rotate %11 by %c32_i32 dim 1 : vector<1x128xf32>, i32 -> vector<1x128xf32>
    %13 = arith.addf %11, %12 : vector<1x128xf32>
    %c64_i32 = arith.constant 64 : i32
    %14 = tpu.dynamic_rotate %13 by %c64_i32 dim 1 : vector<1x128xf32>, i32 -> vector<1x128xf32>
    %15 = arith.addf %13, %14 : vector<1x128xf32>
    %cst_8 = arith.constant 0.001953125 : f32
    %16 = vector.broadcast %cst_8 : f32 to vector<1x128xf32>
    %17 = arith.mulf %15, %16 : vector<1x128xf32>
    %18 = vector.broadcast %17 : vector<1x128xf32> to vector<32x128xf32>
    %19 = arith.subf %3, %18 : vector<32x128xf32>
    %20 = arith.mulf %19, %19 : vector<32x128xf32>
    %cst_9 = arith.constant dense<0.000000e+00> : vector<128xf32>
    %21 = vector.multi_reduction <add>, %20, %cst_9 [0] : vector<32x128xf32> to vector<128xf32>
    %22 = vector.shape_cast %21 : vector<128xf32> to vector<1x128xf32>
    %c8_i32_10 = arith.constant 8 : i32
    %23 = tpu.dynamic_rotate %22 by %c8_i32_10 dim 1 : vector<1x128xf32>, i32 -> vector<1x128xf32>
    %24 = arith.addf %22, %23 : vector<1x128xf32>
    %c16_i32_11 = arith.constant 16 : i32
    %25 = tpu.dynamic_rotate %24 by %c16_i32_11 dim 1 : vector<1x128xf32>, i32 -> vector<1x128xf32>
    %26 = arith.addf %24, %25 : vector<1x128xf32>
    %c32_i32_12 = arith.constant 32 : i32
    %27 = tpu.dynamic_rotate %26 by %c32_i32_12 dim 1 : vector<1x128xf32>, i32 -> vector<1x128xf32>
    %28 = arith.addf %26, %27 : vector<1x128xf32>
    %c64_i32_13 = arith.constant 64 : i32
    %29 = tpu.dynamic_rotate %28 by %c64_i32_13 dim 1 : vector<1x128xf32>, i32 -> vector<1x128xf32>
    %30 = arith.addf %28, %29 : vector<1x128xf32>
    %cst_14 = arith.constant 0.001953125 : f32
    %31 = vector.broadcast %cst_14 : f32 to vector<1x128xf32>
    %32 = arith.mulf %30, %31 : vector<1x128xf32>
    %cst_15 = arith.constant 9.99999974E-6 : f32
    %33 = vector.broadcast %cst_15 : f32 to vector<1x128xf32>
    %34 = arith.addf %32, %33 : vector<1x128xf32>
    %35 = math.rsqrt %34 : vector<1x128xf32>
    %36 = arith.mulf %35, %4 : vector<1x128xf32>
    %37 = vector.broadcast %36 : vector<1x128xf32> to vector<32x128xf32>
    %38 = arith.mulf %19, %37 : vector<32x128xf32>
    %39 = vector.broadcast %5 : vector<1x128xf32> to vector<32x128xf32>
    %40 = arith.addf %38, %39 : vector<32x128xf32>
    %cst_16 = arith.constant 0.000000e+00 : f32
    %41 = vector.broadcast %cst_16 : f32 to vector<32x128xf32>
    %42 = arith.maximumf %40, %41 : vector<32x128xf32>
    %43 = vector.extract_strided_slice %2 {offsets = [0, 128], sizes = [32, 128], strides = [1, 1]} : vector<32x256xf32> to vector<32x128xf32>
    %c0_17 = arith.constant 0 : index
    %c0_18 = arith.constant 0 : index
    %44 = vector.load %arg3[%c0_17, %c0_18] : memref<64x32xf32, #tpu.memory_space<vmem>>, vector<64x32xf32>
    %cst_19 = arith.constant dense<0.000000e+00> : vector<64x128xf32>
    %45 = tpu.matmul %44, %42, %cst_19 {dimension_numbers = #tpu.dot_dimension_numbers<[1], [0], [0], [1], [0, 0, 1, 1], [], []>} : vector<64x32xf32>, vector<32x128xf32>, vector<64x128xf32> -> vector<64x128xf32>
    %46 = vector.extract_strided_slice %45 {offsets = [0, 0], sizes = [32, 128], strides = [1, 1]} : vector<64x128xf32> to vector<32x128xf32>
    %47 = vector.extract_strided_slice %45 {offsets = [32, 0], sizes = [32, 128], strides = [1, 1]} : vector<64x128xf32> to vector<32x128xf32>
    %48 = tpu.concatenate %46, %42, %47 in 1 : vector<32x128xf32>, vector<32x128xf32>, vector<32x128xf32> -> vector<32x384xf32>
    %c0_20 = arith.constant 0 : index
    %c0_21 = arith.constant 0 : index
    %49 = vector.load %arg2[%c0_20, %c0_21] : memref<384x128xf32, #tpu.memory_space<vmem>>, vector<384x128xf32>
    %cst_22 = arith.constant dense<0.000000e+00> : vector<32x128xf32>
    %50 = tpu.matmul %48, %49, %cst_22 {dimension_numbers = #tpu.dot_dimension_numbers<[1], [0], [0], [1], [0, 0, 1, 1], [], []>} : vector<32x384xf32>, vector<384x128xf32>, vector<32x128xf32> -> vector<32x128xf32>
    %c0_23 = arith.constant 0 : index
    %c0_24 = arith.constant 0 : index
    %51 = vector.load %arg6[%c0_23, %c0_24] : memref<1x128xf32, #tpu.memory_space<vmem>>, vector<1x128xf32>
    %c0_25 = arith.constant 0 : index
    %c0_26 = arith.constant 0 : index
    %52 = vector.load %arg7[%c0_25, %c0_26] : memref<1x128xf32, #tpu.memory_space<vmem>>, vector<1x128xf32>
    %cst_27 = arith.constant dense<0.000000e+00> : vector<128xf32>
    %53 = vector.multi_reduction <add>, %50, %cst_27 [0] : vector<32x128xf32> to vector<128xf32>
    %54 = vector.shape_cast %53 : vector<128xf32> to vector<1x128xf32>
    %c8_i32_28 = arith.constant 8 : i32
    %55 = tpu.dynamic_rotate %54 by %c8_i32_28 dim 1 : vector<1x128xf32>, i32 -> vector<1x128xf32>
    %56 = arith.addf %54, %55 : vector<1x128xf32>
    %c16_i32_29 = arith.constant 16 : i32
    %57 = tpu.dynamic_rotate %56 by %c16_i32_29 dim 1 : vector<1x128xf32>, i32 -> vector<1x128xf32>
    %58 = arith.addf %56, %57 : vector<1x128xf32>
    %c32_i32_30 = arith.constant 32 : i32
    %59 = tpu.dynamic_rotate %58 by %c32_i32_30 dim 1 : vector<1x128xf32>, i32 -> vector<1x128xf32>
    %60 = arith.addf %58, %59 : vector<1x128xf32>
    %c64_i32_31 = arith.constant 64 : i32
    %61 = tpu.dynamic_rotate %60 by %c64_i32_31 dim 1 : vector<1x128xf32>, i32 -> vector<1x128xf32>
    %62 = arith.addf %60, %61 : vector<1x128xf32>
    %cst_32 = arith.constant 0.001953125 : f32
    %63 = vector.broadcast %cst_32 : f32 to vector<1x128xf32>
    %64 = arith.mulf %62, %63 : vector<1x128xf32>
    %65 = vector.broadcast %64 : vector<1x128xf32> to vector<32x128xf32>
    %66 = arith.subf %50, %65 : vector<32x128xf32>
    %67 = arith.mulf %66, %66 : vector<32x128xf32>
    %cst_33 = arith.constant dense<0.000000e+00> : vector<128xf32>
    %68 = vector.multi_reduction <add>, %67, %cst_33 [0] : vector<32x128xf32> to vector<128xf32>
    %69 = vector.shape_cast %68 : vector<128xf32> to vector<1x128xf32>
    %c8_i32_34 = arith.constant 8 : i32
    %70 = tpu.dynamic_rotate %69 by %c8_i32_34 dim 1 : vector<1x128xf32>, i32 -> vector<1x128xf32>
    %71 = arith.addf %69, %70 : vector<1x128xf32>
    %c16_i32_35 = arith.constant 16 : i32
    %72 = tpu.dynamic_rotate %71 by %c16_i32_35 dim 1 : vector<1x128xf32>, i32 -> vector<1x128xf32>
    %73 = arith.addf %71, %72 : vector<1x128xf32>
    %c32_i32_36 = arith.constant 32 : i32
    %74 = tpu.dynamic_rotate %73 by %c32_i32_36 dim 1 : vector<1x128xf32>, i32 -> vector<1x128xf32>
    %75 = arith.addf %73, %74 : vector<1x128xf32>
    %c64_i32_37 = arith.constant 64 : i32
    %76 = tpu.dynamic_rotate %75 by %c64_i32_37 dim 1 : vector<1x128xf32>, i32 -> vector<1x128xf32>
    %77 = arith.addf %75, %76 : vector<1x128xf32>
    %cst_38 = arith.constant 0.001953125 : f32
    %78 = vector.broadcast %cst_38 : f32 to vector<1x128xf32>
    %79 = arith.mulf %77, %78 : vector<1x128xf32>
    %cst_39 = arith.constant 9.99999974E-6 : f32
    %80 = vector.broadcast %cst_39 : f32 to vector<1x128xf32>
    %81 = arith.addf %79, %80 : vector<1x128xf32>
    %82 = math.rsqrt %81 : vector<1x128xf32>
    %83 = arith.mulf %82, %51 : vector<1x128xf32>
    %84 = vector.broadcast %83 : vector<1x128xf32> to vector<32x128xf32>
    %85 = arith.mulf %66, %84 : vector<32x128xf32>
    %86 = vector.broadcast %52 : vector<1x128xf32> to vector<32x128xf32>
    %87 = arith.addf %85, %86 : vector<32x128xf32>
    %c0_40 = arith.constant 0 : index
    %c0_41 = arith.constant 0 : index
    %88 = vector.load %arg8[%c0_40, %c0_41] : memref<1x128xf32, #tpu.memory_space<vmem>>, vector<1x128xf32>
    %c0_42 = arith.constant 0 : index
    %c0_43 = arith.constant 0 : index
    %89 = vector.load %arg9[%c0_42, %c0_43] : memref<1x128xf32, #tpu.memory_space<vmem>>, vector<1x128xf32>
    %cst_44 = arith.constant dense<0.000000e+00> : vector<128xf32>
    %90 = vector.multi_reduction <add>, %43, %cst_44 [0] : vector<32x128xf32> to vector<128xf32>
    %91 = vector.shape_cast %90 : vector<128xf32> to vector<1x128xf32>
    %c8_i32_45 = arith.constant 8 : i32
    %92 = tpu.dynamic_rotate %91 by %c8_i32_45 dim 1 : vector<1x128xf32>, i32 -> vector<1x128xf32>
    %93 = arith.addf %91, %92 : vector<1x128xf32>
    %c16_i32_46 = arith.constant 16 : i32
    %94 = tpu.dynamic_rotate %93 by %c16_i32_46 dim 1 : vector<1x128xf32>, i32 -> vector<1x128xf32>
    %95 = arith.addf %93, %94 : vector<1x128xf32>
    %c32_i32_47 = arith.constant 32 : i32
    %96 = tpu.dynamic_rotate %95 by %c32_i32_47 dim 1 : vector<1x128xf32>, i32 -> vector<1x128xf32>
    %97 = arith.addf %95, %96 : vector<1x128xf32>
    %c64_i32_48 = arith.constant 64 : i32
    %98 = tpu.dynamic_rotate %97 by %c64_i32_48 dim 1 : vector<1x128xf32>, i32 -> vector<1x128xf32>
    %99 = arith.addf %97, %98 : vector<1x128xf32>
    %cst_49 = arith.constant 0.001953125 : f32
    %100 = vector.broadcast %cst_49 : f32 to vector<1x128xf32>
    %101 = arith.mulf %99, %100 : vector<1x128xf32>
    %102 = vector.broadcast %101 : vector<1x128xf32> to vector<32x128xf32>
    %103 = arith.subf %43, %102 : vector<32x128xf32>
    %104 = arith.mulf %103, %103 : vector<32x128xf32>
    %cst_50 = arith.constant dense<0.000000e+00> : vector<128xf32>
    %105 = vector.multi_reduction <add>, %104, %cst_50 [0] : vector<32x128xf32> to vector<128xf32>
    %106 = vector.shape_cast %105 : vector<128xf32> to vector<1x128xf32>
    %c8_i32_51 = arith.constant 8 : i32
    %107 = tpu.dynamic_rotate %106 by %c8_i32_51 dim 1 : vector<1x128xf32>, i32 -> vector<1x128xf32>
    %108 = arith.addf %106, %107 : vector<1x128xf32>
    %c16_i32_52 = arith.constant 16 : i32
    %109 = tpu.dynamic_rotate %108 by %c16_i32_52 dim 1 : vector<1x128xf32>, i32 -> vector<1x128xf32>
    %110 = arith.addf %108, %109 : vector<1x128xf32>
    %c32_i32_53 = arith.constant 32 : i32
    %111 = tpu.dynamic_rotate %110 by %c32_i32_53 dim 1 : vector<1x128xf32>, i32 -> vector<1x128xf32>
    %112 = arith.addf %110, %111 : vector<1x128xf32>
    %c64_i32_54 = arith.constant 64 : i32
    %113 = tpu.dynamic_rotate %112 by %c64_i32_54 dim 1 : vector<1x128xf32>, i32 -> vector<1x128xf32>
    %114 = arith.addf %112, %113 : vector<1x128xf32>
    %cst_55 = arith.constant 0.001953125 : f32
    %115 = vector.broadcast %cst_55 : f32 to vector<1x128xf32>
    %116 = arith.mulf %114, %115 : vector<1x128xf32>
    %cst_56 = arith.constant 9.99999974E-6 : f32
    %117 = vector.broadcast %cst_56 : f32 to vector<1x128xf32>
    %118 = arith.addf %116, %117 : vector<1x128xf32>
    %119 = math.rsqrt %118 : vector<1x128xf32>
    %120 = arith.mulf %119, %88 : vector<1x128xf32>
    %121 = vector.broadcast %120 : vector<1x128xf32> to vector<32x128xf32>
    %122 = arith.mulf %103, %121 : vector<32x128xf32>
    %123 = vector.broadcast %89 : vector<1x128xf32> to vector<32x128xf32>
    %124 = arith.addf %122, %123 : vector<32x128xf32>
    %125 = arith.addf %87, %124 : vector<32x128xf32>
    %cst_57 = arith.constant 0.000000e+00 : f32
    %126 = vector.broadcast %cst_57 : f32 to vector<32x128xf32>
    %127 = arith.maximumf %125, %126 : vector<32x128xf32>
    %c0_58 = arith.constant 0 : index
    %c0_59 = arith.constant 0 : index
    %128 = vector.load %arg10[%c0_58, %c0_59] : memref<32x128xf32, #tpu.memory_space<vmem>>, vector<32x128xf32>
    tpu.vector_store %arg10[%c0_58, %c0_59], %127 {strides = array<i32>} : memref<32x128xf32, #tpu.memory_space<vmem>>, vector<32x128xf32>,
    return
  }
}

</mosaic_0001>

<llo_original>
// kernel: tpu_custom_call.1
$region0: #{tpu_custom_call.1}
  #allocation0 [shape = 'u32[]', space=smem, size = 0x4, offset = 0x4, fixed_abs, tag = 'smem constant byte address 0x4 - core index']
  #allocation1 [shape = 'u32[144,128]{1,0:T(1,128)}', space=vmem, size = 0x12000, scoped, tag = 'internal scratch']
  %s0 = inlined_call_operand.vmem [shape: f32[32,192], index: 0, kind: input, shape index: {}]
  %s1 = inlined_call_operand.hbm [shape: f32[192,256], index: 1, kind: input, shape index: {}]
  %s2 = inlined_call_operand.hbm [shape: f32[384,128], index: 2, kind: input, shape index: {}]
  %s3 = inlined_call_operand.vmem [shape: f32[64,32], index: 3, kind: input, shape index: {}]
  %s4 = inlined_call_operand.vmem [shape: f32[1,128], index: 4, kind: input, shape index: {}]
  %s5 = inlined_call_operand.vmem [shape: f32[1,128], index: 5, kind: input, shape index: {}]
  %s6 = inlined_call_operand.vmem [shape: f32[1,128], index: 6, kind: input, shape index: {}]
  %s7 = inlined_call_operand.vmem [shape: f32[1,128], index: 7, kind: input, shape index: {}]
  %s8 = inlined_call_operand.vmem [shape: f32[1,128], index: 8, kind: input, shape index: {}]
  %s9 = inlined_call_operand.vmem [shape: f32[1,128], index: 9, kind: input, shape index: {}]
  %s10 = inlined_call_operand.hbm [shape: f32[32,128], index: 10, kind: output, shape index: {}]
  %s11 = sld [smem:[#allocation0]]
  $region58: #{tpu_custom_call.1} parent=0
    _
  %s13 = ssub.s32 1, %s11
  %s14 = scalar_select 0, %s13, %s11
  $region1: #{tpu_custom_call.1} parent=0
    #allocation2 [shape = 'u8[196608]{0}', space=vmem, size = 0x30000, scoped, tag = 'input window, operand 1, single buffered']
    #allocation3 [shape = 's32[1]{0}', space=sflag, size = 0x4, scoped, tag = 'scoped memory for tpu_custom_call.1']
    #allocation4 [shape = 's32[1]{0}', space=sflag, size = 0x4, scoped, tag = 'scoped memory for tpu_custom_call.1']
    #allocation5 [shape = 'u8[196608]{0}', space=vmem, size = 0x30000, scoped, tag = 'input window, operand 2, single buffered']
    #allocation6 [shape = 's32[1]{0}', space=sflag, size = 0x4, scoped, tag = 'scoped memory for tpu_custom_call.1']
    #allocation7 [shape = 'u8[16384]{0}', space=vmem, size = 0x4000, scoped, tag = 'output window, operand 0, single buffered']
    %15 = vsyncpa [#allocation3], 0
    %16 = vsyncpa [#allocation6], 0
    %17 = vsyncpa [#allocation4], 0
    // Predicated region
    $region2: #{tpu_custom_call.1} parent=1 // pred_check
      _
    $region3: #{tpu_custom_call.1} parent=1 // pred_check_branch
      %19 = sbr.rel (0) target = $region5
    $region4: #{tpu_custom_call.1} parent=1 // pred_region
      _
    $region5: #{tpu_custom_call.1} parent=1 // pred_fallthru
      _
    // Predicated region
    $region6: #{tpu_custom_call.1} parent=1 // pred_check
      _
    $region7: #{tpu_custom_call.1} parent=1 // pred_check_branch
      %21 = sbr.rel (0) target = $region9
    $region8: #{tpu_custom_call.1} parent=1 // pred_region
      %s23 = ssub.s32 6144, 6144
      %24 = vsyncadd [#allocation3], %s23
      %s25 = sshll.u32 [#allocation2], 4
      %s26 = int_to_ptr.vmem [resolvable:$true] %s25
      %31 = dma.hbm_to_vmem [thread:$0]  %s1, 6144, %s26, [#allocation3], 256, 256, 16
    $region9: #{tpu_custom_call.1} parent=1 // pred_fallthru
      _
    // Predicated region
    $region10: #{tpu_custom_call.1} parent=1 // pred_check
      _
    $region11: #{tpu_custom_call.1} parent=1 // pred_check_branch
      %33 = sbr.rel (0) target = $region13
    $region12: #{tpu_custom_call.1} parent=1 // pred_region
      %s35 = ssub.s32 6144, 6144
      %36 = vsyncadd [#allocation6], %s35
      %s37 = sshll.u32 [#allocation5], 4
      %s38 = int_to_ptr.vmem [resolvable:$true] %s37
      %43 = dma.hbm_to_vmem [thread:$0]  %s2, 6144, %s38, [#allocation6], 128, 128, 8
    $region13: #{tpu_custom_call.1} parent=1 // pred_fallthru
      _
    // Predicated region
    $region14: #{tpu_custom_call.1} parent=1 // pred_check
      _
    $region15: #{tpu_custom_call.1} parent=1 // pred_check_branch
      %45 = sbr.rel (0) target = $region17
    $region16: #{tpu_custom_call.1} parent=1 // pred_region
      _
    $region17: #{tpu_custom_call.1} parent=1 // pred_fallthru
      _
    // Predicated region
    $region18: #{tpu_custom_call.1} parent=1 // pred_check
      _
    $region19: #{tpu_custom_call.1} parent=1 // pred_check_branch
      %47 = sbr.rel (0) target = $region21
    $region20: #{tpu_custom_call.1} parent=1 // pred_region
      _
    $region21: #{tpu_custom_call.1} parent=1 // pred_fallthru
      _
    // Predicated region
    $region22: #{tpu_custom_call.1} parent=1 // pred_check
      _
    $region23: #{tpu_custom_call.1} parent=1 // pred_check_branch
      %49 = sbr.rel (0) target = $region25
    $region24: #{tpu_custom_call.1} parent=1 // pred_region
      _
    $region25: #{tpu_custom_call.1} parent=1 // pred_fallthru
      _
    // Predicated region
    $region26: #{tpu_custom_call.1} parent=1 // pred_check
      _
    $region27: #{tpu_custom_call.1} parent=1 // pred_check_branch
      %51 = sbr.rel (0) target = $region29
    $region28: #{tpu_custom_call.1} parent=1 // pred_region
      _
    $region29: #{tpu_custom_call.1} parent=1 // pred_fallthru
      _
    // Predicated region
    $region30: #{tpu_custom_call.1} parent=1 // pred_check
      _
    $region31: #{tpu_custom_call.1} parent=1 // pred_check_branch
      %53 = sbr.rel (0) target = $region33
    $region32: #{tpu_custom_call.1} parent=1 // pred_region
      _
    $region33: #{tpu_custom_call.1} parent=1 // pred_fallthru
      _
    // Predicated region
    $region34: #{tpu_custom_call.1} parent=1 // pred_check
      _
    $region35: #{tpu_custom_call.1} parent=1 // pred_check_branch
      %55 = sbr.rel (0) target = $region37
    $region36: #{tpu_custom_call.1} parent=1 // pred_region
      _
    $region37: #{tpu_custom_call.1} parent=1 // pred_fallthru
      _
    // Predicated region
    $region38: #{tpu_custom_call.1} parent=1 // pred_check
      _
    $region39: #{tpu_custom_call.1} parent=1 // pred_check_branch
      %57 = sbr.rel (0) target = $region41
    $region40: #{tpu_custom_call.1} parent=1 // pred_region
      _
    $region41: #{tpu_custom_call.1} parent=1 // pred_fallthru
      _
    // Predicated region
    $region42: #{tpu_custom_call.1} parent=1 // pred_check
      _
    $region43: #{tpu_custom_call.1} parent=1 // pred_check_branch
      %59 = sbr.rel (0) target = $region45
    $region44: #{tpu_custom_call.1} parent=1 // pred_region
      %60 = dma.done [#allocation3], 6144
    $region45: #{tpu_custom_call.1} parent=1 // pred_fallthru
      _
    // Predicated region
    $region46: #{tpu_custom_call.1} parent=1 // pred_check
      _
    $region47: #{tpu_custom_call.1} parent=1 // pred_check_branch
      %62 = sbr.rel (0) target = $region49
    $region48: #{tpu_custom_call.1} parent=1 // pred_region
      %63 = dma.done [#allocation6], 6144
    $region49: #{tpu_custom_call.1} parent=1 // pred_fallthru
      _
    %v64 = vld [vmem:[%s0] sm:$0xff]
    %v65 = vld [vmem:[%s0 + $0x8] sm:$0xff]
    %v66 = vld [vmem:[%s0 + $0x10] sm:$0xff]
    %v67 = vld [vmem:[%s0 + $0x18] sm:$0xff]
    %v68 = vld [vmem:[%s0 + $0x20] sm:$0xff]
    %v69 = vld [vmem:[%s0 + $0x28] sm:$0xff]
    %v70 = vld [vmem:[%s0 + $0x30] sm:$0xff]
    %v71 = vld [vmem:[%s0 + $0x38] sm:$0xff]
    %v72 = vld [vmem:[#allocation2] sm:$0xff]
    %v73 = vld [vmem:[#allocation2 + $0x8] sm:$0xff]
    %v74 = vld [vmem:[#allocation2 + $0x10] sm:$0xff]
    %v75 = vld [vmem:[#allocation2 + $0x18] sm:$0xff]
    %v76 = vld [vmem:[#allocation2 + $0x20] sm:$0xff]
    %v77 = vld [vmem:[#allocation2 + $0x28] sm:$0xff]
    %v78 = vld [vmem:[#allocation2 + $0x30] sm:$0xff]
    %v79 = vld [vmem:[#allocation2 + $0x38] sm:$0xff]
    %v80 = vld [vmem:[#allocation2 + $0x40] sm:$0xff]
    %v81 = vld [vmem:[#allocation2 + $0x48] sm:$0xff]
    %v82 = vld [vmem:[#allocation2 + $0x50] sm:$0xff]
    %v83 = vld [vmem:[#allocation2 + $0x58] sm:$0xff]
    %v84 = vld [vmem:[#allocation2 + $0x60] sm:$0xff]
    %v85 = vld [vmem:[#allocation2 + $0x68] sm:$0xff]
    %v86 = vld [vmem:[#allocation2 + $0x70] sm:$0xff]
    %v87 = vld [vmem:[#allocation2 + $0x78] sm:$0xff]
    %v88 = vld [vmem:[#allocation2 + $0x80] sm:$0xff]
    %v89 = vld [vmem:[#allocation2 + $0x88] sm:$0xff]
    %v90 = vld [vmem:[#allocation2 + $0x90] sm:$0xff]
    %v91 = vld [vmem:[#allocation2 + $0x98] sm:$0xff]
    %v92 = vld [vmem:[#allocation2 + $0xa0] sm:$0xff]
    %v93 = vld [vmem:[#allocation2 + $0xa8] sm:$0xff]
    %v94 = vld [vmem:[#allocation2 + $0xb0] sm:$0xff]
    %v95 = vld [vmem:[#allocation2 + $0xb8] sm:$0xff]
    %v96 = vld [vmem:[#allocation2 + $0xc0] sm:$0xff]
    %v97 = vld [vmem:[#allocation2 + $0xc8] sm:$0xff]
    %v98 = vld [vmem:[#allocation2 + $0xd0] sm:$0xff]
    %v99 = vld [vmem:[#allocation2 + $0xd8] sm:$0xff]
    %v100 = vld [vmem:[#allocation2 + $0xe0] sm:$0xff]
    %v101 = vld [vmem:[#allocation2 + $0xe8] sm:$0xff]
    %v102 = vld [vmem:[#allocation2 + $0xf0] sm:$0xff]
    %v103 = vld [vmem:[#allocation2 + $0xf8] sm:$0xff]
    %v104 = vld [vmem:[#allocation2 + $0x100] sm:$0xff]
    %v105 = vld [vmem:[#allocation2 + $0x108] sm:$0xff]
    %v106 = vld [vmem:[#allocation2 + $0x110] sm:$0xff]
    %v107 = vld [vmem:[#allocation2 + $0x118] sm:$0xff]
    %v108 = vld [vmem:[#allocation2 + $0x120] sm:$0xff]
    %v109 = vld [vmem:[#allocation2 + $0x128] sm:$0xff]
    %v110 = vld [vmem:[#allocation2 + $0x130] sm:$0xff]
    %v111 = vld [vmem:[#allocation2 + $0x138] sm:$0xff]
    %v112 = vld [vmem:[#allocation2 + $0x140] sm:$0xff]
    %v113 = vld [vmem:[#allocation2 + $0x148] sm:$0xff]
    %v114 = vld [vmem:[#allocation2 + $0x150] sm:$0xff]
    %v115 = vld [vmem:[#allocation2 + $0x158] sm:$0xff]
    %v116 = vld [vmem:[#allocation2 + $0x160] sm:$0xff]
    %v117 = vld [vmem:[#allocation2 + $0x168] sm:$0xff]
    %v118 = vld [vmem:[#allocation2 + $0x170] sm:$0xff]
    %v119 = vld [vmem:[#allocation2 + $0x178] sm:$0xff]
    %vm120 = vcmask 523264
    %v122 = vsel %vm120, %v65, 0
    %v125 = vsel %vm120, %v67, 0
    %v128 = vsel %vm120, %v69, 0
    %v131 = vsel %vm120, %v71, 0
    %133 = vmatprep.subr.mxu0 %v73
    %134 = vmatpush1.msra.mxu0 %v72
    %135 = vmatprep.subr.mxu0 %v75
    %136 = vmatpush1.msra.mxu0 %v74
    %137 = vmatprep.subr.mxu0 %v77
    %138 = vmatpush1.msra.mxu0 %v76
    %139 = vmatprep.subr.mxu0 %v79
    %140 = vmatpush1.msra.mxu0 %v78
    %141 = vmatprep.subr.mxu0 %v81
    %142 = vmatpush1.msra.mxu0 %v80
    %143 = vmatprep.subr.mxu0 %v83
    %144 = vmatpush1.msra.mxu0 %v82
    %145 = vmatprep.subr.mxu0 %v85
    %146 = vmatpush1.msra.mxu0 %v84
    %147 = vmatprep.subr.mxu0 %v87
    %148 = vmatpush1.msra.mxu0 %v86
    %149 = vmatprep.subr.mxu0 %v89
    %150 = vmatpush1.msra.mxu0 %v88
    %151 = vmatprep.subr.mxu0 %v91
    %152 = vmatpush1.msra.mxu0 %v90
    %153 = vmatprep.subr.mxu0 %v93
    %154 = vmatpush1.msra.mxu0 %v92
    %155 = vmatprep.subr.mxu0 %v95
    %156 = vmatpush1.msra.mxu0 %v94
    %157 = vmatprep.subr.mxu0 %v97
    %158 = vmatpush1.msra.mxu0 %v96
    %159 = vmatprep.subr.mxu0 %v99
    %160 = vmatpush1.msra.mxu0 %v98
    %161 = vmatprep.subr.mxu0 %v101
    %162 = vmatpush1.msra.mxu0 %v100
    %163 = vmatprep.subr.mxu0 %v103
    %164 = vmatpush1.msra.mxu0 %v102
    %165 = vmatprep.subr.mxu0 %v105
    %166 = vmatpush1.msra.mxu0 %v104
    %167 = vmatprep.subr.mxu0 %v107
    %168 = vmatpush1.msra.mxu0 %v106
    %169 = vmatprep.subr.mxu0 %v109
    %170 = vmatpush1.msra.mxu0 %v108
    %171 = vmatprep.subr.mxu0 %v111
    %172 = vmatpush1.msra.mxu0 %v110
    %173 = vmatprep.subr.mxu0 %v113
    %174 = vmatpush1.msra.mxu0 %v112
    %175 = vmatprep.subr.mxu0 %v115
    %176 = vmatpush1.msra.mxu0 %v114
    %177 = vmatprep.subr.mxu0 %v117
    %178 = vmatpush1.msra.mxu0 %v116
    %179 = vmatprep.subr.mxu0 %v119
    %180 = vmatpush1.msra.mxu0 %v118
    %181 = vmatprep.subr.mxu0 0.0
    %182 = vmatpush1.msra.mxu0 0.0
    %183 = vmatprep.subr.mxu0 0.0
    %184 = vmatpush1.msra.mxu0 0.0
    %185 = vmatprep.subr.mxu0 0.0
    %186 = vmatpush1.msra.mxu0 0.0
    %187 = vmatprep.subr.mxu0 0.0
    %188 = vmatpush1.msra.mxu0 0.0
    %189 = vmatprep.subr.mxu0 0.0
    %190 = vmatpush1.msra.mxu0 0.0
    %191 = vmatprep.subr.mxu0 0.0
    %192 = vmatpush1.msra.mxu0 0.0
    %193 = vmatprep.subr.mxu0 0.0
    %194 = vmatpush1.msra.mxu0 0.0
    %195 = vmatprep.subr.mxu0 0.0
    %196 = vmatpush1.msra.mxu0 0.0
    %197 = vmatprep.mubr.f32.mxu0 %v122
    %198 = vmatmul.mubr.f32.gmra.mrb[0].mxu0 %v64
    %v199 = vpop.f32.mrb[0].mxu0
    %v200 = vadd.f32 0.0, %v199
    %v201 = vpop.f32.mrb[0].mxu0
    %v202 = vadd.f32 0.0, %v201
    %203 = vmatprep.mubr.f32.mxu0 %v125
    %204 = vmatmul.mubr.f32.gmra.mrb[0].mxu0 %v66
    %v205 = vpop.f32.mrb[0].mxu0
    %v206 = vadd.f32 0.0, %v205
    %v207 = vpop.f32.mrb[0].mxu0
    %v208 = vadd.f32 0.0, %v207
    %209 = vmatprep.mubr.f32.mxu0 %v128
    %210 = vmatmul.mubr.f32.gmra.mrb[0].mxu0 %v68
    %v211 = vpop.f32.mrb[0].mxu0
    %v212 = vadd.f32 0.0, %v211
    %v213 = vpop.f32.mrb[0].mxu0
    %v214 = vadd.f32 0.0, %v213
    %215 = vmatprep.mubr.f32.mxu0 %v131
    %216 = vmatmul.mubr.f32.gmra.mrb[0].mxu0 %v70
    %v217 = vpop.f32.mrb[0].mxu0
    %v218 = vadd.f32 0.0, %v217
    %v219 = vpop.f32.mrb[0].mxu0
    %v220 = vadd.f32 0.0, %v219
    %221 = vdwg.mxu0
    %v222 = vld [vmem:[%s4] sm:$0x1]
    %v223 = vld [vmem:[%s5] sm:$0x1]
    %v224 = vadd.f32 %v200, %v206
    %v225 = vadd.f32 %v224, %v212
    %v226 = vadd.f32 %v225, %v218
    %v227 = vrot.slane %v226, 4
    %v228 = vadd.f32 %v226, %v227
    %v229 = vrot.slane %v228, 2
    %v230 = vadd.f32 %v228, %v229
    %v231 = vrot.slane %v230, 1
    %v232 = vadd.f32 %v230, %v231
    %233 = vrot.lane.b32.xlu0 %v232, 8
    %v234 = vpop.permute.xlu0 %233
    %v235 = vadd.f32 %v232, %v234
    %236 = vrot.lane.b32.xlu0 %v235, 16
    %v237 = vpop.permute.xlu0 %236
    %v238 = vadd.f32 %v235, %v237
    %239 = vrot.lane.b32.xlu0 %v238, 32
    %v240 = vpop.permute.xlu0 %239
    %v241 = vadd.f32 %v238, %v240
    %242 = vrot.lane.b32.xlu0 %v241, 64
    %v243 = vpop.permute.xlu0 %242
    %v244 = vadd.f32 %v241, %v243
    %v245 = vmul.f32 %v244, 0.001953125
    %v246 = vlaneseq
    %v247 = vshrl.u32 %v246, 7
    %v248 = vsub.s32 0, %v247
    %v249 = vrot.slane %v245, %v248
    %v250 = vsub.f32 %v200, %v249
    %v251 = vsub.f32 %v206, %v249
    %v252 = vsub.f32 %v212, %v249
    %v253 = vsub.f32 %v218, %v249
    %v254 = vmul.f32 %v250, %v250
    %v255 = vmul.f32 %v251, %v251
    %v256 = vmul.f32 %v252, %v252
    %v257 = vmul.f32 %v253, %v253
    %v258 = vadd.f32 %v254, %v255
    %v259 = vadd.f32 %v258, %v256
    %v260 = vadd.f32 %v259, %v257
    %v261 = vrot.slane %v260, 4
    %v262 = vadd.f32 %v260, %v261
    %v263 = vrot.slane %v262, 2
    %v264 = vadd.f32 %v262, %v263
    %v265 = vrot.slane %v264, 1
    %v266 = vadd.f32 %v264, %v265
    %267 = vrot.lane.b32.xlu0 %v266, 8
    %v268 = vpop.permute.xlu0 %267
    %v269 = vadd.f32 %v266, %v268
    %270 = vrot.lane.b32.xlu0 %v269, 16
    %v271 = vpop.permute.xlu0 %270
    %v272 = vadd.f32 %v269, %v271
    %273 = vrot.lane.b32.xlu0 %v272, 32
    %v274 = vpop.permute.xlu0 %273
    %v275 = vadd.f32 %v272, %v274
    %276 = vrot.lane.b32.xlu0 %v275, 64
    %v277 = vpop.permute.xlu0 %276
    %v278 = vadd.f32 %v275, %v277
    %v279 = vmul.f32 %v278, 0.001953125
    %v280 = vadd.f32 %v279, 1e-05
    %v281 = vrsqrt.pop %v280
    %v282 = vmul.f32 %v281, %v222
    %v283 = vlaneseq
    %v284 = vshrl.u32 %v283, 7
    %v285 = vsub.s32 0, %v284
    %v286 = vrot.slane %v282, %v285
    %v287 = vmul.f32 %v250, %v286
    %v288 = vmul.f32 %v251, %v286
    %v289 = vmul.f32 %v252, %v286
    %v290 = vmul.f32 %v253, %v286
    %v292 = vlaneseq
    %v293 = vshrl.u32 %v292, 7
    %v294 = vsub.s32 0, %v293
    %v295 = vrot.slane %v223, %v294
    %v297 = vadd.f32 %v287, %v295
    %v298 = vadd.f32 %v288, %v295
    %v299 = vadd.f32 %v289, %v295
    %v300 = vadd.f32 %v290, %v295
    %v301 = vmax.f32 %v297, 0.0
    %v302 = vmax.f32 %v298, 0.0
    %v303 = vmax.f32 %v299, 0.0
    %v304 = vmax.f32 %v300, 0.0
    %v305 = vld [vmem:[%s3] sm:$0xff]
    %v306 = vld [vmem:[%s3 + $0x8] sm:$0xff]
    %v307 = vld [vmem:[%s3 + $0x10] sm:$0xff]
    %v308 = vld [vmem:[%s3 + $0x18] sm:$0xff]
    %v309 = vld [vmem:[%s3 + $0x20] sm:$0xff]
    %v310 = vld [vmem:[%s3 + $0x28] sm:$0xff]
    %v311 = vld [vmem:[%s3 + $0x30] sm:$0xff]
    %v312 = vld [vmem:[%s3 + $0x38] sm:$0xff]
    %vm313 = vcmask 261120
    %v315 = vsel %vm313, %v305, 0
    %v318 = vsel %vm313, %v306, 0
    %v321 = vsel %vm313, %v307, 0
    %v324 = vsel %vm313, %v308, 0
    %v327 = vsel %vm313, %v309, 0
    %v330 = vsel %vm313, %v310, 0
    %v333 = vsel %vm313, %v311, 0
    %v336 = vsel %vm313, %v312, 0
    %338 = vmatprep.subr.mxu0 0.0
    %339 = vmatpush1.msra.mxu0 %v301
    %340 = vmatprep.subr.mxu0 0.0
    %341 = vmatpush1.msra.mxu0 %v302
    %342 = vmatprep.subr.mxu0 0.0
    %343 = vmatpush1.msra.mxu0 %v303
    %344 = vmatprep.subr.mxu0 0.0
    %345 = vmatpush1.msra.mxu0 %v304
    %346 = vmatprep.subr.mxu0 0.0
    %347 = vmatpush1.msra.mxu0 0.0
    %348 = vmatprep.subr.mxu0 0.0
    %349 = vmatpush1.msra.mxu0 0.0
    %350 = vmatprep.subr.mxu0 0.0
    %351 = vmatpush1.msra.mxu0 0.0
    %352 = vmatprep.subr.mxu0 0.0
    %353 = vmatpush1.msra.mxu0 0.0
    %354 = vmatprep.subr.mxu0 0.0
    %355 = vmatpush1.msra.mxu0 0.0
    %356 = vmatprep.subr.mxu0 0.0
    %357 = vmatpush1.msra.mxu0 0.0
    %358 = vmatprep.subr.mxu0 0.0
    %359 = vmatpush1.msra.mxu0 0.0
    %360 = vmatprep.subr.mxu0 0.0
    %361 = vmatpush1.msra.mxu0 0.0
    %362 = vmatprep.subr.mxu0 0.0
    %363 = vmatpush1.msra.mxu0 0.0
    %364 = vmatprep.subr.mxu0 0.0
    %365 = vmatpush1.msra.mxu0 0.0
    %366 = vmatprep.subr.mxu0 0.0
    %367 = vmatpush1.msra.mxu0 0.0
    %368 = vmatprep.subr.mxu0 0.0
    %369 = vmatpush1.msra.mxu0 0.0
    %370 = vmatprep.subr.mxu0 0.0
    %371 = vmatpush1.msra.mxu0 0.0
    %372 = vmatprep.subr.mxu0 0.0
    %373 = vmatpush1.msra.mxu0 0.0
    %374 = vmatprep.subr.mxu0 0.0
    %375 = vmatpush1.msra.mxu0 0.0
    %376 = vmatprep.subr.mxu0 0.0
    %377 = vmatpush1.msra.mxu0 0.0
    %378 = vmatprep.subr.mxu0 0.0
    %379 = vmatpush1.msra.mxu0 0.0
    %380 = vmatprep.subr.mxu0 0.0
    %381 = vmatpush1.msra.mxu0 0.0
    %382 = vmatprep.subr.mxu0 0.0
    %383 = vmatpush1.msra.mxu0 0.0
    %384 = vmatprep.subr.mxu0 0.0
    %385 = vmatpush1.msra.mxu0 0.0
    %386 = vmatprep.subr.mxu0 0.0
    %387 = vmatpush1.msra.mxu0 0.0
    %388 = vmatprep.subr.mxu0 0.0
    %389 = vmatpush1.msra.mxu0 0.0
    %390 = vmatprep.subr.mxu0 0.0
    %391 = vmatpush1.msra.mxu0 0.0
    %392 = vmatprep.subr.mxu0 0.0
    %393 = vmatpush1.msra.mxu0 0.0
    %394 = vmatprep.subr.mxu0 0.0
    %395 = vmatpush1.msra.mxu0 0.0
    %396 = vmatprep.subr.mxu0 0.0
    %397 = vmatpush1.msra.mxu0 0.0
    %398 = vmatprep.subr.mxu0 0.0
    %399 = vmatpush1.msra.mxu0 0.0
    %400 = vmatprep.subr.mxu0 0.0
    %401 = vmatpush1.msra.mxu0 0.0
    %402 = vmatprep.mubr.f32.mxu0 0.0
    %403 = vmatmul.mubr.f32.gmra.mrb[0].mxu0 %v315
    %v404 = vpop.f32.mrb[0].mxu0
    %v405 = vadd.f32 0.0, %v404
    %v406 = vpop.f32.mrb[0].mxu0
    %407 = vmatprep.mubr.f32.mxu0 0.0
    %408 = vmatmul.mubr.f32.gmra.mrb[0].mxu0 %v318
    %v409 = vpop.f32.mrb[0].mxu0
    %v410 = vadd.f32 0.0, %v409
    %v411 = vpop.f32.mrb[0].mxu0
    %412 = vmatprep.mubr.f32.mxu0 0.0
    %413 = vmatmul.mubr.f32.gmra.mrb[0].mxu0 %v321
    %v414 = vpop.f32.mrb[0].mxu0
    %v415 = vadd.f32 0.0, %v414
    %v416 = vpop.f32.mrb[0].mxu0
    %417 = vmatprep.mubr.f32.mxu0 0.0
    %418 = vmatmul.mubr.f32.gmra.mrb[0].mxu0 %v324
    %v419 = vpop.f32.mrb[0].mxu0
    %v420 = vadd.f32 0.0, %v419
    %v421 = vpop.f32.mrb[0].mxu0
    %422 = vmatprep.mubr.f32.mxu0 0.0
    %423 = vmatmul.mubr.f32.gmra.mrb[0].mxu0 %v327
    %v424 = vpop.f32.mrb[0].mxu0
    %v425 = vadd.f32 0.0, %v424
    %v426 = vpop.f32.mrb[0].mxu0
    %427 = vmatprep.mubr.f32.mxu0 0.0
    %428 = vmatmul.mubr.f32.gmra.mrb[0].mxu0 %v330
    %v429 = vpop.f32.mrb[0].mxu0
    %v430 = vadd.f32 0.0, %v429
    %v431 = vpop.f32.mrb[0].mxu0
    %432 = vmatprep.mubr.f32.mxu0 0.0
    %433 = vmatmul.mubr.f32.gmra.mrb[0].mxu0 %v333
    %v434 = vpop.f32.mrb[0].mxu0
    %v435 = vadd.f32 0.0, %v434
    %v436 = vpop.f32.mrb[0].mxu0
    %437 = vmatprep.mubr.f32.mxu0 0.0
    %438 = vmatmul.mubr.f32.gmra.mrb[0].mxu0 %v336
    %v439 = vpop.f32.mrb[0].mxu0
    %v440 = vadd.f32 0.0, %v439
    %v441 = vpop.f32.mrb[0].mxu0
    %442 = vdwg.mxu0
    %v443 = vld [vmem:[#allocation5] sm:$0xff]
    %v444 = vld [vmem:[#allocation5 + $0x8] sm:$0xff]
    %v445 = vld [vmem:[#allocation5 + $0x10] sm:$0xff]
    %v446 = vld [vmem:[#allocation5 + $0x18] sm:$0xff]
    %v447 = vld [vmem:[#allocation5 + $0x20] sm:$0xff]
    %v448 = vld [vmem:[#allocation5 + $0x28] sm:$0xff]
    %v449 = vld [vmem:[#allocation5 + $0x30] sm:$0xff]
    %v450 = vld [vmem:[#allocation5 + $0x38] sm:$0xff]
    %v451 = vld [vmem:[#allocation5 + $0x40] sm:$0xff]
    %v452 = vld [vmem:[#allocation5 + $0x48] sm:$0xff]
    %v453 = vld [vmem:[#allocation5 + $0x50] sm:$0xff]
    %v454 = vld [vmem:[#allocation5 + $0x58] sm:$0xff]
    %v455 = vld [vmem:[#allocation5 + $0x60] sm:$0xff]
    %v456 = vld [vmem:[#allocation5 + $0x68] sm:$0xff]
    %v457 = vld [vmem:[#allocation5 + $0x70] sm:$0xff]
    %v458 = vld [vmem:[#allocation5 + $0x78] sm:$0xff]
    %v459 = vld [vmem:[#allocation5 + $0x80] sm:$0xff]
    %v460 = vld [vmem:[#allocation5 + $0x88] sm:$0xff]
    %v461 = vld [vmem:[#allocation5 + $0x90] sm:$0xff]
    %v462 = vld [vmem:[#allocation5 + $0x98] sm:$0xff]
    %v463 = vld [vmem:[#allocation5 + $0xa0] sm:$0xff]
    %v464 = vld [vmem:[#allocation5 + $0xa8] sm:$0xff]
    %v465 = vld [vmem:[#allocation5 + $0xb0] sm:$0xff]
    %v466 = vld [vmem:[#allocation5 + $0xb8] sm:$0xff]
    %v467 = vld [vmem:[#allocation5 + $0xc0] sm:$0xff]
    %v468 = vld [vmem:[#allocation5 + $0xc8] sm:$0xff]
    %v469 = vld [vmem:[#allocation5 + $0xd0] sm:$0xff]
    %v470 = vld [vmem:[#allocation5 + $0xd8] sm:$0xff]
    %v471 = vld [vmem:[#allocation5 + $0xe0] sm:$0xff]
    %v472 = vld [vmem:[#allocation5 + $0xe8] sm:$0xff]
    %v473 = vld [vmem:[#allocation5 + $0xf0] sm:$0xff]
    %v474 = vld [vmem:[#allocation5 + $0xf8] sm:$0xff]
    %v475 = vld [vmem:[#allocation5 + $0x100] sm:$0xff]
    %v476 = vld [vmem:[#allocation5 + $0x108] sm:$0xff]
    %v477 = vld [vmem:[#allocation5 + $0x110] sm:$0xff]
    %v478 = vld [vmem:[#allocation5 + $0x118] sm:$0xff]
    %v479 = vld [vmem:[#allocation5 + $0x120] sm:$0xff]
    %v480 = vld [vmem:[#allocation5 + $0x128] sm:$0xff]
    %v481 = vld [vmem:[#allocation5 + $0x130] sm:$0xff]
    %v482 = vld [vmem:[#allocation5 + $0x138] sm:$0xff]
    %v483 = vld [vmem:[#allocation5 + $0x140] sm:$0xff]
    %v484 = vld [vmem:[#allocation5 + $0x148] sm:$0xff]
    %v485 = vld [vmem:[#allocation5 + $0x150] sm:$0xff]
    %v486 = vld [vmem:[#allocation5 + $0x158] sm:$0xff]
    %v487 = vld [vmem:[#allocation5 + $0x160] sm:$0xff]
    %v488 = vld [vmem:[#allocation5 + $0x168] sm:$0xff]
    %v489 = vld [vmem:[#allocation5 + $0x170] sm:$0xff]
    %v490 = vld [vmem:[#allocation5 + $0x178] sm:$0xff]
    %491 = vmatprep.subr.mxu0 0.0
    %492 = vmatpush1.msra.mxu0 %v443
    %493 = vmatprep.subr.mxu0 0.0
    %494 = vmatpush1.msra.mxu0 %v444
    %495 = vmatprep.subr.mxu0 0.0
    %496 = vmatpush1.msra.mxu0 %v445
    %497 = vmatprep.subr.mxu0 0.0
    %498 = vmatpush1.msra.mxu0 %v446
    %499 = vmatprep.subr.mxu0 0.0
    %500 = vmatpush1.msra.mxu0 %v447
    %501 = vmatprep.subr.mxu0 0.0
    %502 = vmatpush1.msra.mxu0 %v448
    %503 = vmatprep.subr.mxu0 0.0
    %504 = vmatpush1.msra.mxu0 %v449
    %505 = vmatprep.subr.mxu0 0.0
    %506 = vmatpush1.msra.mxu0 %v450
    %507 = vmatprep.subr.mxu0 0.0
    %508 = vmatpush1.msra.mxu0 %v451
    %509 = vmatprep.subr.mxu0 0.0
    %510 = vmatpush1.msra.mxu0 %v452
    %511 = vmatprep.subr.mxu0 0.0
    %512 = vmatpush1.msra.mxu0 %v453
    %513 = vmatprep.subr.mxu0 0.0
    %514 = vmatpush1.msra.mxu0 %v454
    %515 = vmatprep.subr.mxu0 0.0
    %516 = vmatpush1.msra.mxu0 %v455
    %517 = vmatprep.subr.mxu0 0.0
    %518 = vmatpush1.msra.mxu0 %v456
    %519 = vmatprep.subr.mxu0 0.0
    %520 = vmatpush1.msra.mxu0 %v457
    %521 = vmatprep.subr.mxu0 0.0
    %522 = vmatpush1.msra.mxu0 %v458
    %523 = vmatprep.subr.mxu0 0.0
    %524 = vmatpush1.msra.mxu0 %v459
    %525 = vmatprep.subr.mxu0 0.0
    %526 = vmatpush1.msra.mxu0 %v460
    %527 = vmatprep.subr.mxu0 0.0
    %528 = vmatpush1.msra.mxu0 %v461
    %529 = vmatprep.subr.mxu0 0.0
    %530 = vmatpush1.msra.mxu0 %v462
    %531 = vmatprep.subr.mxu0 0.0
    %532 = vmatpush1.msra.mxu0 %v463
    %533 = vmatprep.subr.mxu0 0.0
    %534 = vmatpush1.msra.mxu0 %v464
    %535 = vmatprep.subr.mxu0 0.0
    %536 = vmatpush1.msra.mxu0 %v465
    %537 = vmatprep.subr.mxu0 0.0
    %538 = vmatpush1.msra.mxu0 %v466
    %539 = vmatprep.subr.mxu0 0.0
    %540 = vmatpush1.msra.mxu0 %v467
    %541 = vmatprep.subr.mxu0 0.0
    %542 = vmatpush1.msra.mxu0 %v468
    %543 = vmatprep.subr.mxu0 0.0
    %544 = vmatpush1.msra.mxu0 %v469
    %545 = vmatprep.subr.mxu0 0.0
    %546 = vmatpush1.msra.mxu0 %v470
    %547 = vmatprep.subr.mxu0 0.0
    %548 = vmatpush1.msra.mxu0 %v471
    %549 = vmatprep.subr.mxu0 0.0
    %550 = vmatpush1.msra.mxu0 %v472
    %551 = vmatprep.subr.mxu0 0.0
    %552 = vmatpush1.msra.mxu0 %v473
    %553 = vmatprep.subr.mxu0 0.0
    %554 = vmatpush1.msra.mxu0 %v474
    %555 = vmatprep.mubr.f32.mxu0 %v301
    %556 = vmatmul.mubr.f32.gmra.mrb[0].mxu0 %v405
    %v557 = vpop.f32.mrb[0].mxu0
    %v558 = vadd.f32 0.0, %v557
    %v559 = vpop.f32.mrb[0].mxu0
    %560 = vmatprep.mubr.f32.mxu0 %v302
    %561 = vmatmul.mubr.f32.gmra.mrb[0].mxu0 %v410
    %v562 = vpop.f32.mrb[0].mxu0
    %v563 = vadd.f32 0.0, %v562
    %v564 = vpop.f32.mrb[0].mxu0
    %565 = vmatprep.mubr.f32.mxu0 %v303
    %566 = vmatmul.mubr.f32.gmra.mrb[0].mxu0 %v415
    %v567 = vpop.f32.mrb[0].mxu0
    %v568 = vadd.f32 0.0, %v567
    %v569 = vpop.f32.mrb[0].mxu0
    %570 = vmatprep.mubr.f32.mxu0 %v304
    %571 = vmatmul.mubr.f32.gmra.mrb[0].mxu0 %v420
    %v572 = vpop.f32.mrb[0].mxu0
    %v573 = vadd.f32 0.0, %v572
    %v574 = vpop.f32.mrb[0].mxu0
    %575 = vdwg.mxu0
    %576 = vmatprep.subr.mxu0 0.0
    %577 = vmatpush1.msra.mxu0 %v475
    %578 = vmatprep.subr.mxu0 0.0
    %579 = vmatpush1.msra.mxu0 %v476
    %580 = vmatprep.subr.mxu0 0.0
    %581 = vmatpush1.msra.mxu0 %v477
    %582 = vmatprep.subr.mxu0 0.0
    %583 = vmatpush1.msra.mxu0 %v478
    %584 = vmatprep.subr.mxu0 0.0
    %585 = vmatpush1.msra.mxu0 %v479
    %586 = vmatprep.subr.mxu0 0.0
    %587 = vmatpush1.msra.mxu0 %v480
    %588 = vmatprep.subr.mxu0 0.0
    %589 = vmatpush1.msra.mxu0 %v481
    %590 = vmatprep.subr.mxu0 0.0
    %591 = vmatpush1.msra.mxu0 %v482
    %592 = vmatprep.subr.mxu0 0.0
    %593 = vmatpush1.msra.mxu0 %v483
    %594 = vmatprep.subr.mxu0 0.0
    %595 = vmatpush1.msra.mxu0 %v484
    %596 = vmatprep.subr.mxu0 0.0
    %597 = vmatpush1.msra.mxu0 %v485
    %598 = vmatprep.subr.mxu0 0.0
    %599 = vmatpush1.msra.mxu0 %v486
    %600 = vmatprep.subr.mxu0 0.0
    %601 = vmatpush1.msra.mxu0 %v487
    %602 = vmatprep.subr.mxu0 0.0
    %603 = vmatpush1.msra.mxu0 %v488
    %604 = vmatprep.subr.mxu0 0.0
    %605 = vmatpush1.msra.mxu0 %v489
    %606 = vmatprep.subr.mxu0 0.0
    %607 = vmatpush1.msra.mxu0 %v490
    %608 = vmatprep.subr.mxu0 0.0
    %609 = vmatpush1.msra.mxu0 0.0
    %610 = vmatprep.subr.mxu0 0.0
    %611 = vmatpush1.msra.mxu0 0.0
    %612 = vmatprep.subr.mxu0 0.0
    %613 = vmatpush1.msra.mxu0 0.0
    %614 = vmatprep.subr.mxu0 0.0
    %615 = vmatpush1.msra.mxu0 0.0
    %616 = vmatprep.subr.mxu0 0.0
    %617 = vmatpush1.msra.mxu0 0.0
    %618 = vmatprep.subr.mxu0 0.0
    %619 = vmatpush1.msra.mxu0 0.0
    %620 = vmatprep.subr.mxu0 0.0
    %621 = vmatpush1.msra.mxu0 0.0
    %622 = vmatprep.subr.mxu0 0.0
    %623 = vmatpush1.msra.mxu0 0.0
    %624 = vmatprep.subr.mxu0 0.0
    %625 = vmatpush1.msra.mxu0 0.0
    %626 = vmatprep.subr.mxu0 0.0
    %627 = vmatpush1.msra.mxu0 0.0
    %628 = vmatprep.subr.mxu0 0.0
    %629 = vmatpush1.msra.mxu0 0.0
    %630 = vmatprep.subr.mxu0 0.0
    %631 = vmatpush1.msra.mxu0 0.0
    %632 = vmatprep.subr.mxu0 0.0
    %633 = vmatpush1.msra.mxu0 0.0
    %634 = vmatprep.subr.mxu0 0.0
    %635 = vmatpush1.msra.mxu0 0.0
    %636 = vmatprep.subr.mxu0 0.0
    %637 = vmatpush1.msra.mxu0 0.0
    %638 = vmatprep.subr.mxu0 0.0
    %639 = vmatpush1.msra.mxu0 0.0
    %640 = vmatprep.mubr.f32.mxu0 0.0
    %641 = vmatmul.mubr.f32.gmra.mrb[0].mxu0 %v425
    %v642 = vpop.f32.mrb[0].mxu0
    %v643 = vadd.f32 %v558, %v642
    %v644 = vpop.f32.mrb[0].mxu0
    %645 = vmatprep.mubr.f32.mxu0 0.0
    %646 = vmatmul.mubr.f32.gmra.mrb[0].mxu0 %v430
    %v647 = vpop.f32.mrb[0].mxu0
    %v648 = vadd.f32 %v563, %v647
    %v649 = vpop.f32.mrb[0].mxu0
    %650 = vmatprep.mubr.f32.mxu0 0.0
    %651 = vmatmul.mubr.f32.gmra.mrb[0].mxu0 %v435
    %v652 = vpop.f32.mrb[0].mxu0
    %v653 = vadd.f32 %v568, %v652
    %v654 = vpop.f32.mrb[0].mxu0
    %655 = vmatprep.mubr.f32.mxu0 0.0
    %656 = vmatmul.mubr.f32.gmra.mrb[0].mxu0 %v440
    %v657 = vpop.f32.mrb[0].mxu0
    %v658 = vadd.f32 %v573, %v657
    %v659 = vpop.f32.mrb[0].mxu0
    %660 = vdwg.mxu0
    %v661 = vld [vmem:[%s6] sm:$0x1]
    %v662 = vld [vmem:[%s7] sm:$0x1]
    %v663 = vadd.f32 %v643, %v648
    %v664 = vadd.f32 %v663, %v653
    %v665 = vadd.f32 %v664, %v658
    %v666 = vrot.slane %v665, 4
    %v667 = vadd.f32 %v665, %v666
    %v668 = vrot.slane %v667, 2
    %v669 = vadd.f32 %v667, %v668
    %v670 = vrot.slane %v669, 1
    %v671 = vadd.f32 %v669, %v670
    %672 = vrot.lane.b32.xlu0 %v671, 8
    %v673 = vpop.permute.xlu0 %672
    %v674 = vadd.f32 %v671, %v673
    %675 = vrot.lane.b32.xlu0 %v674, 16
    %v676 = vpop.permute.xlu0 %675
    %v677 = vadd.f32 %v674, %v676
    %678 = vrot.lane.b32.xlu0 %v677, 32
    %v679 = vpop.permute.xlu0 %678
    %v680 = vadd.f32 %v677, %v679
    %681 = vrot.lane.b32.xlu0 %v680, 64
    %v682 = vpop.permute.xlu0 %681
    %v683 = vadd.f32 %v680, %v682
    %v684 = vmul.f32 %v683, 0.001953125
    %v685 = vlaneseq
    %v686 = vshrl.u32 %v685, 7
    %v687 = vsub.s32 0, %v686
    %v688 = vrot.slane %v684, %v687
    %v689 = vsub.f32 %v643, %v688
    %v690 = vsub.f32 %v648, %v688
    %v691 = vsub.f32 %v653, %v688
    %v692 = vsub.f32 %v658, %v688
    %v693 = vmul.f32 %v689, %v689
    %v694 = vmul.f32 %v690, %v690
    %v695 = vmul.f32 %v691, %v691
    %v696 = vmul.f32 %v692, %v692
    %v697 = vadd.f32 %v693, %v694
    %v698 = vadd.f32 %v697, %v695
    %v699 = vadd.f32 %v698, %v696
    %v700 = vrot.slane %v699, 4
    %v701 = vadd.f32 %v699, %v700
    %v702 = vrot.slane %v701, 2
    %v703 = vadd.f32 %v701, %v702
    %v704 = vrot.slane %v703, 1
    %v705 = vadd.f32 %v703, %v704
    %706 = vrot.lane.b32.xlu0 %v705, 8
    %v707 = vpop.permute.xlu0 %706
    %v708 = vadd.f32 %v705, %v707
    %709 = vrot.lane.b32.xlu0 %v708, 16
    %v710 = vpop.permute.xlu0 %709
    %v711 = vadd.f32 %v708, %v710
    %712 = vrot.lane.b32.xlu0 %v711, 32
    %v713 = vpop.permute.xlu0 %712
    %v714 = vadd.f32 %v711, %v713
    %715 = vrot.lane.b32.xlu0 %v714, 64
    %v716 = vpop.permute.xlu0 %715
    %v717 = vadd.f32 %v714, %v716
    %v718 = vmul.f32 %v717, 0.001953125
    %v719 = vadd.f32 %v718, 1e-05
    %v720 = vrsqrt.pop %v719
    %v721 = vmul.f32 %v720, %v661
    %v722 = vlaneseq
    %v723 = vshrl.u32 %v722, 7
    %v724 = vsub.s32 0, %v723
    %v725 = vrot.slane %v721, %v724
    %v726 = vmul.f32 %v689, %v725
    %v727 = vmul.f32 %v690, %v725
    %v728 = vmul.f32 %v691, %v725
    %v729 = vmul.f32 %v692, %v725
    %v731 = vlaneseq
    %v732 = vshrl.u32 %v731, 7
    %v733 = vsub.s32 0, %v732
    %v734 = vrot.slane %v662, %v733
    %v736 = vadd.f32 %v726, %v734
    %v737 = vadd.f32 %v727, %v734
    %v738 = vadd.f32 %v728, %v734
    %v739 = vadd.f32 %v729, %v734
    %v740 = vld [vmem:[%s8] sm:$0x1]
    %v741 = vld [vmem:[%s9] sm:$0x1]
    %v742 = vadd.f32 %v202, %v208
    %v743 = vadd.f32 %v742, %v214
    %v744 = vadd.f32 %v743, %v220
    %v745 = vrot.slane %v744, 4
    %v746 = vadd.f32 %v744, %v745
    %v747 = vrot.slane %v746, 2
    %v748 = vadd.f32 %v746, %v747
    %v749 = vrot.slane %v748, 1
    %v750 = vadd.f32 %v748, %v749
    %751 = vrot.lane.b32.xlu0 %v750, 8
    %v752 = vpop.permute.xlu0 %751
    %v753 = vadd.f32 %v750, %v752
    %754 = vrot.lane.b32.xlu0 %v753, 16
    %v755 = vpop.permute.xlu0 %754
    %v756 = vadd.f32 %v753, %v755
    %757 = vrot.lane.b32.xlu0 %v756, 32
    %v758 = vpop.permute.xlu0 %757
    %v759 = vadd.f32 %v756, %v758
    %760 = vrot.lane.b32.xlu0 %v759, 64
    %v761 = vpop.permute.xlu0 %760
    %v762 = vadd.f32 %v759, %v761
    %v763 = vmul.f32 %v762, 0.001953125
    %v764 = vlaneseq
    %v765 = vshrl.u32 %v764, 7
    %v766 = vsub.s32 0, %v765
    %v767 = vrot.slane %v763, %v766
    %v768 = vsub.f32 %v202, %v767
    %v769 = vsub.f32 %v208, %v767
    %v770 = vsub.f32 %v214, %v767
    %v771 = vsub.f32 %v220, %v767
    %v772 = vmul.f32 %v768, %v768
    %v773 = vmul.f32 %v769, %v769
    %v774 = vmul.f32 %v770, %v770
    %v775 = vmul.f32 %v771, %v771
    %v776 = vadd.f32 %v772, %v773
    %v777 = vadd.f32 %v776, %v774
    %v778 = vadd.f32 %v777, %v775
    %v779 = vrot.slane %v778, 4
    %v780 = vadd.f32 %v778, %v779
    %v781 = vrot.slane %v780, 2
    %v782 = vadd.f32 %v780, %v781
    %v783 = vrot.slane %v782, 1
    %v784 = vadd.f32 %v782, %v783
    %785 = vrot.lane.b32.xlu0 %v784, 8
    %v786 = vpop.permute.xlu0 %785
    %v787 = vadd.f32 %v784, %v786
    %788 = vrot.lane.b32.xlu0 %v787, 16
    %v789 = vpop.permute.xlu0 %788
    %v790 = vadd.f32 %v787, %v789
    %791 = vrot.lane.b32.xlu0 %v790, 32
    %v792 = vpop.permute.xlu0 %791
    %v793 = vadd.f32 %v790, %v792
    %794 = vrot.lane.b32.xlu0 %v793, 64
    %v795 = vpop.permute.xlu0 %794
    %v796 = vadd.f32 %v793, %v795
    %v797 = vmul.f32 %v796, 0.001953125
    %v798 = vadd.f32 %v797, 1e-05
    %v799 = vrsqrt.pop %v798
    %v800 = vmul.f32 %v799, %v740
    %v801 = vlaneseq
    %v802 = vshrl.u32 %v801, 7
    %v803 = vsub.s32 0, %v802
    %v804 = vrot.slane %v800, %v803
    %v805 = vmul.f32 %v768, %v804
    %v806 = vmul.f32 %v769, %v804
    %v807 = vmul.f32 %v770, %v804
    %v808 = vmul.f32 %v771, %v804
    %v810 = vlaneseq
    %v811 = vshrl.u32 %v810, 7
    %v812 = vsub.s32 0, %v811
    %v813 = vrot.slane %v741, %v812
    %v815 = vadd.f32 %v805, %v813
    %v816 = vadd.f32 %v806, %v813
    %v817 = vadd.f32 %v807, %v813
    %v818 = vadd.f32 %v808, %v813
    %v819 = vadd.f32 %v736, %v815
    %v820 = vadd.f32 %v737, %v816
    %v821 = vadd.f32 %v738, %v817
    %v822 = vadd.f32 %v739, %v818
    %v823 = vmax.f32 %v819, 0.0
    %v824 = vmax.f32 %v820, 0.0
    %v825 = vmax.f32 %v821, 0.0
    %v826 = vmax.f32 %v822, 0.0
    %827 = vst [vmem:[#allocation7] sm:$0xff] %v823
    %828 = vst [vmem:[#allocation7 + $0x8] sm:$0xff] %v824
    %829 = vst [vmem:[#allocation7 + $0x10] sm:$0xff] %v825
    %830 = vst [vmem:[#allocation7 + $0x18] sm:$0xff] %v826
    // Predicated region
    $region50: #{tpu_custom_call.1} parent=1 // pred_check
      _
    $region51: #{tpu_custom_call.1} parent=1 // pred_check_branch
      %832 = sbr.rel (0) target = $region53
    $region52: #{tpu_custom_call.1} parent=1 // pred_region
      %s834 = ssub.s32 512, 512
      %835 = vsyncadd [#allocation4], %s834
      %s836 = sshll.u32 [#allocation7], 4
      %s837 = int_to_ptr.vmem [resolvable:$true] %s836
      %842 = dma.vmem_to_hbm [thread:$0]  %s837, 512, %s10, [#allocation4], 128, 128, 8
    $region53: #{tpu_custom_call.1} parent=1 // pred_fallthru
      _
    // Predicated region
    $region54: #{tpu_custom_call.1} parent=1 // pred_check
      _
    $region55: #{tpu_custom_call.1} parent=1 // pred_check_branch
      %844 = sbr.rel (0) target = $region57
    $region56: #{tpu_custom_call.1} parent=1 // pred_region
      %845 = dma.done [#allocation4], 512
    $region57: #{tpu_custom_call.1} parent=1 // pred_fallthru
      _
    %846 = vsyncpa [#allocation3], 1
    %847 = vsyncpa [#allocation6], 1
    %848 = vsyncpa [#allocation4], 1

</llo_original>
